<compile_context>
chip_gen: v7x
topology: tpu7x:2x2x1
jax: 0.10.0
libtpu: 0.0.40
codegen_flags: <defaults>
</compile_context>

<pallas_src>
import jax
import jax.numpy as jnp
from jax.experimental import pallas as pl
from jax.experimental.pallas import tpu as pltpu


_BASE_TOKEN_TILE = 512      # preferred token-tile rows (multiple of 16)
_VMEM_HEADROOM = 16 << 20   # headroom left for the compiler


def _round_up(x, m):
    return (x + m - 1) // m * m


def _vmem_capacity_bytes():
    try:
        info = pltpu.get_tpu_info()
        cap = int(getattr(info, "vmem_capacity_bytes", 0))
        if cap > 0:
            return cap
    except Exception:
        pass
    return 64 << 20  # smallest current generation (v7x per-TC VMEM)


# ---------------------------------------------------------------------------
# Kernels
# ---------------------------------------------------------------------------
def _moe_resident_kernel(x_ref, g_ref, w1_ref, b1_ref, w2_ref, b2_ref, o_ref):
    """All expert weights VMEM-resident; static unrolled loop over experts."""
    x = x_ref[...]                                  # (TN, D) bf16
    num_experts = w1_ref.shape[0]
    acc = jnp.zeros(o_ref.shape, jnp.float32)
    for e in range(num_experts):                    # static unroll (E is small)
        h = jnp.dot(x, w1_ref[e], preferred_element_type=jnp.float32)
        h = jnp.maximum(h + b1_ref[e], 0.0)
        y = jnp.dot(h.astype(w2_ref.dtype), w2_ref[e],
                    preferred_element_type=jnp.float32) + b2_ref[e]
        acc = acc + g_ref[e] * y                    # (TN,1) gate column broadcast
    o_ref[...] = acc
    # TODO(synk): nn.Dropout(0.1) inside Expert is a no-op in eval mode and is omitted.


def _moe_stream_kernel(x_ref, g_ref, w1_ref, b1_ref, w2_ref, b2_ref, o_ref):
    """grid=(token_tiles, experts): per-expert weights streamed; the output
    tile is VMEM-resident over the (inner) expert axis and accumulated into."""
    e = pl.program_id(1)

    @pl.when(e == 0)
    def _init():
        o_ref[...] = jnp.zeros_like(o_ref)

    h = jnp.dot(x_ref[...], w1_ref[0], preferred_element_type=jnp.float32)
    h = jnp.maximum(h + b1_ref[0], 0.0)
    y = jnp.dot(h.astype(w2_ref.dtype), w2_ref[0],
                preferred_element_type=jnp.float32) + b2_ref[0]
    o_ref[...] += g_ref[0] * y


# ---------------------------------------------------------------------------
# VMEM footprint estimates + token-tile selection
# ---------------------------------------------------------------------------
def _resident_vmem_bytes(tn, d, h, e):
    bf16, f32 = 2, 4
    weights = e * (d * h + h * d) * bf16 + e * (h + d) * f32  # resident, single buffer
    x_in = 2 * tn * d * bf16                                  # double-buffered x tile
    gates = 2 * e * tn * f32                                  # double-buffered gate cols
    out = 2 * tn * d * f32                                    # double-buffered out tile
    hidden = tn * h * (f32 + bf16)                            # hidden temp + bf16 cast
    return weights + x_in + gates + out + hidden


def _stream_vmem_bytes(tn, d, h):
    bf16, f32 = 2, 4
    per_step = (tn * d * bf16 + tn * f32
                + d * h * bf16 + h * f32
                + h * d * bf16 + d * f32)
    out = 2 * tn * d * f32
    hidden = tn * h * (f32 + bf16)
    return 2 * per_step + out + hidden


def _choose_token_tile(n_tokens, footprint_fn, vmem_limit):
    n16 = _round_up(max(n_tokens, 16), 16)
    tn = min(_BASE_TOKEN_TILE, n16)
    # Prefer >= 2 token tiles when possible so v7x's 2 TensorCores both work.
    if tn >= n16 and n16 >= 32:
        tn = _round_up(-(-n16 // 2), 16)
    # Shrink until the estimated footprint fits the VMEM budget.
    while tn > 16 and footprint_fn(tn) > vmem_limit:
        tn = max(16, _round_up(tn // 2, 16))
    return tn


# ---------------------------------------------------------------------------
# Expert mixture wrapper
# ---------------------------------------------------------------------------
def sparse_moe_experts(flat_x, gates, w1, b1, w2, b2, *, force_stream=False):
    """flat_x: (N, D) f32; gates: (N, E) sparse-softmax weights (exact zeros
    outside the top-k); w1 (E,D,H), b1 (E,H), w2 (E,H,D), b2 (E,D)."""
    N, D = flat_x.shape
    E, _, H = w1.shape

    capacity = _vmem_capacity_bytes()
    vmem_limit = max(capacity - _VMEM_HEADROOM, 32 << 20)

    weight_bytes = E * 2 * D * H * 2          # stacked bf16 W1 + W2
    resident = (not force_stream) and (weight_bytes <= capacity // 4)

    if resident:
        footprint = lambda tn: _resident_vmem_bytes(tn, D, H, E)
    else:
        footprint = lambda tn: _stream_vmem_bytes(tn, D, H)
    TN = _choose_token_tile(N, footprint, vmem_limit)

    N_pad = _round_up(N, TN)
    num_tiles = N_pad // TN
    if N_pad != N:
        pad = N_pad - N
        flat_x = jnp.pad(flat_x, ((0, pad), (0, 0)))
        gates = jnp.pad(gates, ((0, pad), (0, 0)))   # padded rows: gate == 0

    # Gate columns precomputed as (E, N_pad, 1) f32 -> kernel only broadcasts.
    g_cols = jnp.transpose(gates.astype(jnp.float32), (1, 0))[:, :, None]

    # bf16 MXU operands; biases / gates / accumulation stay f32.
    x_bf = flat_x.astype(jnp.bfloat16)
    w1_bf = w1.astype(jnp.bfloat16)
    w2_bf = w2.astype(jnp.bfloat16)
    b1r = b1[:, None, :].astype(jnp.float32)   # (E, 1, H)
    b2r = b2[:, None, :].astype(jnp.float32)   # (E, 1, D)

    if resident:
        grid_spec = pltpu.PrefetchScalarGridSpec(
            num_scalar_prefetch=0,
            grid=(num_tiles,),
            in_specs=[
                pl.BlockSpec((TN, D), lambda n: (n, 0)),        # x tile
                pl.BlockSpec((E, TN, 1), lambda n: (0, n, 0)),  # gate columns
                pl.BlockSpec((E, D, H), lambda n: (0, 0, 0)),   # all W1 (resident)
                pl.BlockSpec((E, 1, H), lambda n: (0, 0, 0)),   # all b1
                pl.BlockSpec((E, H, D), lambda n: (0, 0, 0)),   # all W2
                pl.BlockSpec((E, 1, D), lambda n: (0, 0, 0)),   # all b2
            ],
            out_specs=pl.BlockSpec((TN, D), lambda n: (n, 0)),
        )
        kernel = _moe_resident_kernel
        dim_sem = ("parallel",)
    else:
        grid_spec = pltpu.PrefetchScalarGridSpec(
            num_scalar_prefetch=0,
            grid=(num_tiles, E),                                 # expert axis innermost
            in_specs=[
                pl.BlockSpec((TN, D), lambda n, e: (n, 0)),        # x tile (resident over e)
                pl.BlockSpec((1, TN, 1), lambda n, e: (e, n, 0)),  # expert e's gate column
                pl.BlockSpec((1, D, H), lambda n, e: (e, 0, 0)),   # W1[e]
                pl.BlockSpec((1, 1, H), lambda n, e: (e, 0, 0)),   # b1[e]
                pl.BlockSpec((1, H, D), lambda n, e: (e, 0, 0)),   # W2[e]
                pl.BlockSpec((1, 1, D), lambda n, e: (e, 0, 0)),   # b2[e]
            ],
            out_specs=pl.BlockSpec((TN, D), lambda n, e: (n, 0)),  # resident over e
        )
        kernel = _moe_stream_kernel
        dim_sem = ("parallel", "arbitrary")

    out = pl.pallas_call(
        kernel,
        out_shape=jax.ShapeDtypeStruct((N_pad, D), jnp.float32),
        grid_spec=grid_spec,
        compiler_params=pltpu.CompilerParams(
            dimension_semantics=dim_sem,
            vmem_limit_bytes=int(vmem_limit),
        ),
    )(x_bf, g_cols, w1_bf, b1r, w2_bf, b2r)

    return out[:N]


# ---------------------------------------------------------------------------
# NoisyTopkRouter (glue in plain JAX: tiny matmuls + top_k / mask / softmax)
# ---------------------------------------------------------------------------
def noisy_topk_router(x, wr, br, wn, bn, top_k, noise_key):
    # nn.Linear: y = x @ W.T + b, weight shape (E, D)
    logits = jnp.einsum("btd,ed->bte", x, wr) + br
    noise_logits = jnp.einsum("btd,ed->bte", x, wn) + bn
    noise = jax.random.normal(noise_key, logits.shape, logits.dtype) * jax.nn.softplus(noise_logits)
    noisy = logits + noise

    _, top_idx = jax.lax.top_k(noisy, top_k)                       # (B, T, K)
    in_topk = jnp.any(jax.nn.one_hot(top_idx, noisy.shape[-1], dtype=bool), axis=-2)
    sparse_logits = jnp.where(in_topk, noisy, -jnp.inf)
    gating = jax.nn.softmax(sparse_logits, axis=-1)                # exact zeros outside top-k
    return gating, top_idx


def sparse_moe_forward(x, params, top_k, noise_key, *, force_stream=False):
    B, T, D = x.shape
    gating, _ = noisy_topk_router(
        x, params["wr"], params["br"], params["wn"], params["bn"], top_k, noise_key
    )
    flat_x = x.reshape(-1, D)
    flat_g = gating.reshape(-1, gating.shape[-1])
    out = sparse_moe_experts(
        flat_x, flat_g, params["w1"], params["b1"], params["w2"], params["b2"],
        force_stream=force_stream,
    )
    return out.reshape(B, T, D)


# ---------------------------------------------------------------------------
# Deterministic parameter init (nn.Linear-style uniform(-1/sqrt(fan_in), +))
# ---------------------------------------------------------------------------
def init_params(key, n_embed, num_experts):
    H = 4 * n_embed
    ks = jax.random.split(key, 8)

    def lin(k, fan_in, shape):
        bound = 1.0 / jnp.sqrt(fan_in)
        return jax.random.uniform(k, shape, jnp.float32, -bound, bound)

    return dict(
        wr=lin(ks[0], n_embed, (num_experts, n_embed)),
        br=lin(ks[1], n_embed, (num_experts,)),
        wn=lin(ks[2], n_embed, (num_experts, n_embed)),
        bn=lin(ks[3], n_embed, (num_experts,)),
        # expert i: Linear(D->H) weight (H, D) used as x @ W.T -> store (D, H)
        w1=jnp.transpose(lin(ks[4], n_embed, (num_experts, H, n_embed)), (0, 2, 1)),
        b1=lin(ks[5], n_embed, (num_experts, H)),
        w2=jnp.transpose(lin(ks[6], H, (num_experts, n_embed, H)), (0, 2, 1)),
        b2=lin(ks[7], H, (num_experts, n_embed)),
    )


# Pure-JAX f32 reference of the dense-equivalent forward (correctness check).
def _reference(x, params, top_k, noise_key):
    B, T, D = x.shape
    gating, _ = noisy_topk_router(
        x, params["wr"], params["br"], params["wn"], params["bn"], top_k, noise_key
    )
    flat_x = x.reshape(-1, D)
    flat_g = gating.reshape(-1, gating.shape[-1])
    out = jnp.zeros_like(flat_x)
    E = params["w1"].shape[0]
    for e in range(E):
        h = jnp.maximum(flat_x @ params["w1"][e] + params["b1"][e], 0.0)
        y = h @ params["w2"][e] + params["b2"][e]
        out = out + flat_g[:, e:e + 1] * y
    return out.reshape(B, T, D)


if __name__ == "__main__":
    n_embed, num_experts, top_k = 32, 4, 2
    B, T = 2, 8

    key = jax.random.PRNGKey(0)
    k_param, k_x, k_noise = jax.random.split(key, 3)

    params = init_params(k_param, n_embed, num_experts)
    x = jax.random.normal(k_x, (B, T, n_embed), jnp.float32)

    ref = _reference(x, params, top_k, k_noise)

    # Resident-weights path (default for small stacked expert weights).
    out = jax.block_until_ready(sparse_moe_forward(x, params, top_k, k_noise))
    assert out.shape == (B, T, n_embed)
    # bf16 MXU operands vs f32 reference -> moderately loose tolerance.
    assert jnp.allclose(out, ref, atol=3e-2, rtol=3e-2)

    # Streaming path (used when expert weights exceed the VMEM budget).
    out_s = jax.block_until_ready(
        sparse_moe_forward(x, params, top_k, k_noise, force_stream=True))
    assert jnp.allclose(out_s, ref, atol=3e-2, rtol=3e-2)

    print("KERNEL_OK")
</pallas_src>

<mosaic_0001>
module attributes {stable_mosaic.version = 11 : i64} {
  func.func @_moe_resident_kernel(%arg0: i32, %arg1: memref<16x32xbf16, #tpu.memory_space<vmem>>, %arg2: memref<4x16x1xf32, #tpu.memory_space<vmem>>, %arg3: memref<4x32x128xbf16, #tpu.memory_space<vmem>>, %arg4: memref<4x1x128xf32, #tpu.memory_space<vmem>>, %arg5: memref<4x128x32xbf16, #tpu.memory_space<vmem>>, %arg6: memref<4x1x32xf32, #tpu.memory_space<vmem>>, %arg7: memref<16x32xf32, #tpu.memory_space<vmem>>) attributes {dimension_semantics = [#tpu.dimension_semantics<parallel>], iteration_bounds = array<i64: 1>, scalar_prefetch = 0 : i64, scratch_operands = 0 : i64, tpu.core_type = #tpu.core_type<tc>, window_params = [{transform_indices = @transform_0, window_bounds = array<i64: 16, 32>}, {transform_indices = @transform_1, window_bounds = array<i64: 4, 16, 1>}, {pipeline_mode = #tpu.pipeline_mode<synchronous>, transform_indices = @transform_2, window_bounds = array<i64: 4, 32, 128>}, {pipeline_mode = #tpu.pipeline_mode<synchronous>, transform_indices = @transform_3, window_bounds = array<i64: 4, 1, 128>}, {pipeline_mode = #tpu.pipeline_mode<synchronous>, transform_indices = @transform_4, window_bounds = array<i64: 4, 128, 32>}, {pipeline_mode = #tpu.pipeline_mode<synchronous>, transform_indices = @transform_5, window_bounds = array<i64: 4, 1, 32>}, {transform_indices = @transform_6, window_bounds = array<i64: 16, 32>}]} {
    %c0 = arith.constant 0 : index
    %c0_0 = arith.constant 0 : index
    %0 = vector.load %arg1[%c0, %c0_0] : memref<16x32xbf16, #tpu.memory_space<vmem>>, vector<16x32xbf16>
    %cst = arith.constant 0.000000e+00 : f32
    %1 = vector.broadcast %cst : f32 to vector<16x32xf32>
    %c0_1 = arith.constant 0 : index
    %c0_2 = arith.constant 0 : index
    %c0_3 = arith.constant 0 : index
    %2 = vector.load %arg3[%c0_1, %c0_2, %c0_3] : memref<4x32x128xbf16, #tpu.memory_space<vmem>>, vector<1x32x128xbf16>
    %3 = vector.shape_cast %2 : vector<1x32x128xbf16> to vector<32x128xbf16>
    %cst_4 = arith.constant dense<0.000000e+00> : vector<16x128xf32>
    %4 = tpu.matmul %0, %3, %cst_4 {dimension_numbers = #tpu.dot_dimension_numbers<[1], [0], [0], [1], [0, 0, 1, 1], [], []>} : vector<16x32xbf16>, vector<32x128xbf16>, vector<16x128xf32> -> vector<16x128xf32>
    %c0_5 = arith.constant 0 : index
    %c0_6 = arith.constant 0 : index
    %c0_7 = arith.constant 0 : index
    %5 = vector.load %arg4[%c0_5, %c0_6, %c0_7] : memref<4x1x128xf32, #tpu.memory_space<vmem>>, vector<1x1x128xf32>
    %6 = vector.shape_cast %5 : vector<1x1x128xf32> to vector<1x128xf32>
    %7 = vector.broadcast %6 : vector<1x128xf32> to vector<16x128xf32>
    %8 = arith.addf %4, %7 : vector<16x128xf32>
    %cst_8 = arith.constant 0.000000e+00 : f32
    %9 = vector.broadcast %cst_8 : f32 to vector<16x128xf32>
    %10 = arith.maximumf %8, %9 : vector<16x128xf32>
    %11 = arith.truncf %10 : vector<16x128xf32> to vector<16x128xbf16>
    %c0_9 = arith.constant 0 : index
    %c0_10 = arith.constant 0 : index
    %c0_11 = arith.constant 0 : index
    %12 = vector.load %arg5[%c0_9, %c0_10, %c0_11] : memref<4x128x32xbf16, #tpu.memory_space<vmem>>, vector<1x128x32xbf16>
    %13 = vector.shape_cast %12 : vector<1x128x32xbf16> to vector<128x32xbf16>
    %cst_12 = arith.constant dense<0.000000e+00> : vector<16x32xf32>
    %14 = tpu.matmul %11, %13, %cst_12 {dimension_numbers = #tpu.dot_dimension_numbers<[1], [0], [0], [1], [0, 0, 1, 1], [], []>} : vector<16x128xbf16>, vector<128x32xbf16>, vector<16x32xf32> -> vector<16x32xf32>
    %c0_13 = arith.constant 0 : index
    %c0_14 = arith.constant 0 : index
    %c0_15 = arith.constant 0 : index
    %15 = vector.load %arg6[%c0_13, %c0_14, %c0_15] : memref<4x1x32xf32, #tpu.memory_space<vmem>>, vector<1x1x32xf32>
    %16 = vector.shape_cast %15 : vector<1x1x32xf32> to vector<1x32xf32>
    %17 = vector.broadcast %16 : vector<1x32xf32> to vector<16x32xf32>
    %18 = arith.addf %14, %17 : vector<16x32xf32>
    %c0_16 = arith.constant 0 : index
    %c0_17 = arith.constant 0 : index
    %c0_18 = arith.constant 0 : index
    %19 = vector.load %arg2[%c0_16, %c0_17, %c0_18] : memref<4x16x1xf32, #tpu.memory_space<vmem>>, vector<1x16x1xf32>
    %20 = vector.shape_cast %19 : vector<1x16x1xf32> to vector<16x1xf32>
    %21 = vector.broadcast %20 : vector<16x1xf32> to vector<16x32xf32>
    %22 = arith.mulf %21, %18 : vector<16x32xf32>
    %23 = arith.addf %1, %22 : vector<16x32xf32>
    %c1 = arith.constant 1 : index
    %c0_19 = arith.constant 0 : index
    %c0_20 = arith.constant 0 : index
    %24 = vector.load %arg3[%c1, %c0_19, %c0_20] : memref<4x32x128xbf16, #tpu.memory_space<vmem>>, vector<1x32x128xbf16>
    %25 = vector.shape_cast %24 : vector<1x32x128xbf16> to vector<32x128xbf16>
    %cst_21 = arith.constant dense<0.000000e+00> : vector<16x128xf32>
    %26 = tpu.matmul %0, %25, %cst_21 {dimension_numbers = #tpu.dot_dimension_numbers<[1], [0], [0], [1], [0, 0, 1, 1], [], []>} : vector<16x32xbf16>, vector<32x128xbf16>, vector<16x128xf32> -> vector<16x128xf32>
    %c1_22 = arith.constant 1 : index
    %c0_23 = arith.constant 0 : index
    %c0_24 = arith.constant 0 : index
    %27 = vector.load %arg4[%c1_22, %c0_23, %c0_24] : memref<4x1x128xf32, #tpu.memory_space<vmem>>, vector<1x1x128xf32>
    %28 = vector.shape_cast %27 : vector<1x1x128xf32> to vector<1x128xf32>
    %29 = vector.broadcast %28 : vector<1x128xf32> to vector<16x128xf32>
    %30 = arith.addf %26, %29 : vector<16x128xf32>
    %cst_25 = arith.constant 0.000000e+00 : f32
    %31 = vector.broadcast %cst_25 : f32 to vector<16x128xf32>
    %32 = arith.maximumf %30, %31 : vector<16x128xf32>
    %33 = arith.truncf %32 : vector<16x128xf32> to vector<16x128xbf16>
    %c1_26 = arith.constant 1 : index
    %c0_27 = arith.constant 0 : index
    %c0_28 = arith.constant 0 : index
    %34 = vector.load %arg5[%c1_26, %c0_27, %c0_28] : memref<4x128x32xbf16, #tpu.memory_space<vmem>>, vector<1x128x32xbf16>
    %35 = vector.shape_cast %34 : vector<1x128x32xbf16> to vector<128x32xbf16>
    %cst_29 = arith.constant dense<0.000000e+00> : vector<16x32xf32>
    %36 = tpu.matmul %33, %35, %cst_29 {dimension_numbers = #tpu.dot_dimension_numbers<[1], [0], [0], [1], [0, 0, 1, 1], [], []>} : vector<16x128xbf16>, vector<128x32xbf16>, vector<16x32xf32> -> vector<16x32xf32>
    %c1_30 = arith.constant 1 : index
    %c0_31 = arith.constant 0 : index
    %c0_32 = arith.constant 0 : index
    %37 = vector.load %arg6[%c1_30, %c0_31, %c0_32] : memref<4x1x32xf32, #tpu.memory_space<vmem>>, vector<1x1x32xf32>
    %38 = vector.shape_cast %37 : vector<1x1x32xf32> to vector<1x32xf32>
    %39 = vector.broadcast %38 : vector<1x32xf32> to vector<16x32xf32>
    %40 = arith.addf %36, %39 : vector<16x32xf32>
    %c1_33 = arith.constant 1 : index
    %c0_34 = arith.constant 0 : index
    %c0_35 = arith.constant 0 : index
    %41 = vector.load %arg2[%c1_33, %c0_34, %c0_35] : memref<4x16x1xf32, #tpu.memory_space<vmem>>, vector<1x16x1xf32>
    %42 = vector.shape_cast %41 : vector<1x16x1xf32> to vector<16x1xf32>
    %43 = vector.broadcast %42 : vector<16x1xf32> to vector<16x32xf32>
    %44 = arith.mulf %43, %40 : vector<16x32xf32>
    %45 = arith.addf %23, %44 : vector<16x32xf32>
    %c2 = arith.constant 2 : index
    %c0_36 = arith.constant 0 : index
    %c0_37 = arith.constant 0 : index
    %46 = vector.load %arg3[%c2, %c0_36, %c0_37] : memref<4x32x128xbf16, #tpu.memory_space<vmem>>, vector<1x32x128xbf16>
    %47 = vector.shape_cast %46 : vector<1x32x128xbf16> to vector<32x128xbf16>
    %cst_38 = arith.constant dense<0.000000e+00> : vector<16x128xf32>
    %48 = tpu.matmul %0, %47, %cst_38 {dimension_numbers = #tpu.dot_dimension_numbers<[1], [0], [0], [1], [0, 0, 1, 1], [], []>} : vector<16x32xbf16>, vector<32x128xbf16>, vector<16x128xf32> -> vector<16x128xf32>
    %c2_39 = arith.constant 2 : index
    %c0_40 = arith.constant 0 : index
    %c0_41 = arith.constant 0 : index
    %49 = vector.load %arg4[%c2_39, %c0_40, %c0_41] : memref<4x1x128xf32, #tpu.memory_space<vmem>>, vector<1x1x128xf32>
    %50 = vector.shape_cast %49 : vector<1x1x128xf32> to vector<1x128xf32>
    %51 = vector.broadcast %50 : vector<1x128xf32> to vector<16x128xf32>
    %52 = arith.addf %48, %51 : vector<16x128xf32>
    %cst_42 = arith.constant 0.000000e+00 : f32
    %53 = vector.broadcast %cst_42 : f32 to vector<16x128xf32>
    %54 = arith.maximumf %52, %53 : vector<16x128xf32>
    %55 = arith.truncf %54 : vector<16x128xf32> to vector<16x128xbf16>
    %c2_43 = arith.constant 2 : index
    %c0_44 = arith.constant 0 : index
    %c0_45 = arith.constant 0 : index
    %56 = vector.load %arg5[%c2_43, %c0_44, %c0_45] : memref<4x128x32xbf16, #tpu.memory_space<vmem>>, vector<1x128x32xbf16>
    %57 = vector.shape_cast %56 : vector<1x128x32xbf16> to vector<128x32xbf16>
    %cst_46 = arith.constant dense<0.000000e+00> : vector<16x32xf32>
    %58 = tpu.matmul %55, %57, %cst_46 {dimension_numbers = #tpu.dot_dimension_numbers<[1], [0], [0], [1], [0, 0, 1, 1], [], []>} : vector<16x128xbf16>, vector<128x32xbf16>, vector<16x32xf32> -> vector<16x32xf32>
    %c2_47 = arith.constant 2 : index
    %c0_48 = arith.constant 0 : index
    %c0_49 = arith.constant 0 : index
    %59 = vector.load %arg6[%c2_47, %c0_48, %c0_49] : memref<4x1x32xf32, #tpu.memory_space<vmem>>, vector<1x1x32xf32>
    %60 = vector.shape_cast %59 : vector<1x1x32xf32> to vector<1x32xf32>
    %61 = vector.broadcast %60 : vector<1x32xf32> to vector<16x32xf32>
    %62 = arith.addf %58, %61 : vector<16x32xf32>
    %c2_50 = arith.constant 2 : index
    %c0_51 = arith.constant 0 : index
    %c0_52 = arith.constant 0 : index
    %63 = vector.load %arg2[%c2_50, %c0_51, %c0_52] : memref<4x16x1xf32, #tpu.memory_space<vmem>>, vector<1x16x1xf32>
    %64 = vector.shape_cast %63 : vector<1x16x1xf32> to vector<16x1xf32>
    %65 = vector.broadcast %64 : vector<16x1xf32> to vector<16x32xf32>
    %66 = arith.mulf %65, %62 : vector<16x32xf32>
    %67 = arith.addf %45, %66 : vector<16x32xf32>
    %c3 = arith.constant 3 : index
    %c0_53 = arith.constant 0 : index
    %c0_54 = arith.constant 0 : index
    %68 = vector.load %arg3[%c3, %c0_53, %c0_54] : memref<4x32x128xbf16, #tpu.memory_space<vmem>>, vector<1x32x128xbf16>
    %69 = vector.shape_cast %68 : vector<1x32x128xbf16> to vector<32x128xbf16>
    %cst_55 = arith.constant dense<0.000000e+00> : vector<16x128xf32>
    %70 = tpu.matmul %0, %69, %cst_55 {dimension_numbers = #tpu.dot_dimension_numbers<[1], [0], [0], [1], [0, 0, 1, 1], [], []>} : vector<16x32xbf16>, vector<32x128xbf16>, vector<16x128xf32> -> vector<16x128xf32>
    %c3_56 = arith.constant 3 : index
    %c0_57 = arith.constant 0 : index
    %c0_58 = arith.constant 0 : index
    %71 = vector.load %arg4[%c3_56, %c0_57, %c0_58] : memref<4x1x128xf32, #tpu.memory_space<vmem>>, vector<1x1x128xf32>
    %72 = vector.shape_cast %71 : vector<1x1x128xf32> to vector<1x128xf32>
    %73 = vector.broadcast %72 : vector<1x128xf32> to vector<16x128xf32>
    %74 = arith.addf %70, %73 : vector<16x128xf32>
    %cst_59 = arith.constant 0.000000e+00 : f32
    %75 = vector.broadcast %cst_59 : f32 to vector<16x128xf32>
    %76 = arith.maximumf %74, %75 : vector<16x128xf32>
    %77 = arith.truncf %76 : vector<16x128xf32> to vector<16x128xbf16>
    %c3_60 = arith.constant 3 : index
    %c0_61 = arith.constant 0 : index
    %c0_62 = arith.constant 0 : index
    %78 = vector.load %arg5[%c3_60, %c0_61, %c0_62] : memref<4x128x32xbf16, #tpu.memory_space<vmem>>, vector<1x128x32xbf16>
    %79 = vector.shape_cast %78 : vector<1x128x32xbf16> to vector<128x32xbf16>
    %cst_63 = arith.constant dense<0.000000e+00> : vector<16x32xf32>
    %80 = tpu.matmul %77, %79, %cst_63 {dimension_numbers = #tpu.dot_dimension_numbers<[1], [0], [0], [1], [0, 0, 1, 1], [], []>} : vector<16x128xbf16>, vector<128x32xbf16>, vector<16x32xf32> -> vector<16x32xf32>
    %c3_64 = arith.constant 3 : index
    %c0_65 = arith.constant 0 : index
    %c0_66 = arith.constant 0 : index
    %81 = vector.load %arg6[%c3_64, %c0_65, %c0_66] : memref<4x1x32xf32, #tpu.memory_space<vmem>>, vector<1x1x32xf32>
    %82 = vector.shape_cast %81 : vector<1x1x32xf32> to vector<1x32xf32>
    %83 = vector.broadcast %82 : vector<1x32xf32> to vector<16x32xf32>
    %84 = arith.addf %80, %83 : vector<16x32xf32>
    %c3_67 = arith.constant 3 : index
    %c0_68 = arith.constant 0 : index
    %c0_69 = arith.constant 0 : index
    %85 = vector.load %arg2[%c3_67, %c0_68, %c0_69] : memref<4x16x1xf32, #tpu.memory_space<vmem>>, vector<1x16x1xf32>
    %86 = vector.shape_cast %85 : vector<1x16x1xf32> to vector<16x1xf32>
    %87 = vector.broadcast %86 : vector<16x1xf32> to vector<16x32xf32>
    %88 = arith.mulf %87, %84 : vector<16x32xf32>
    %89 = arith.addf %67, %88 : vector<16x32xf32>
    %c0_70 = arith.constant 0 : index
    %c0_71 = arith.constant 0 : index
    %90 = vector.load %arg7[%c0_70, %c0_71] : memref<16x32xf32, #tpu.memory_space<vmem>>, vector<16x32xf32>
    tpu.vector_store %arg7[%c0_70, %c0_71], %89 {strides = array<i32>} : memref<16x32xf32, #tpu.memory_space<vmem>>, vector<16x32xf32>,
    return
  }
  func.func @transform_0(%arg0: i32) -> (i32, i32) {
    %c0_i32 = arith.constant 0 : i32
    %c0_i32_0 = arith.constant 0 : i32
    return %arg0, %c0_i32 : i32, i32
  }
  func.func @transform_1(%arg0: i32) -> (i32, i32, i32) {
    %c0_i32 = arith.constant 0 : i32
    %c0_i32_0 = arith.constant 0 : i32
    %c0_i32_1 = arith.constant 0 : i32
    return %c0_i32, %arg0, %c0_i32_0 : i32, i32, i32
  }
  func.func @transform_2(%arg0: i32) -> (i32, i32, i32) {
    %c0_i32 = arith.constant 0 : i32
    %c0_i32_0 = arith.constant 0 : i32
    %c0_i32_1 = arith.constant 0 : i32
    %c0_i32_2 = arith.constant 0 : i32
    return %c0_i32, %c0_i32_0, %c0_i32_1 : i32, i32, i32
  }
  func.func @transform_3(%arg0: i32) -> (i32, i32, i32) {
    %c0_i32 = arith.constant 0 : i32
    %c0_i32_0 = arith.constant 0 : i32
    %c0_i32_1 = arith.constant 0 : i32
    %c0_i32_2 = arith.constant 0 : i32
    return %c0_i32, %c0_i32_0, %c0_i32_1 : i32, i32, i32
  }
  func.func @transform_4(%arg0: i32) -> (i32, i32, i32) {
    %c0_i32 = arith.constant 0 : i32
    %c0_i32_0 = arith.constant 0 : i32
    %c0_i32_1 = arith.constant 0 : i32
    %c0_i32_2 = arith.constant 0 : i32
    return %c0_i32, %c0_i32_0, %c0_i32_1 : i32, i32, i32
  }
  func.func @transform_5(%arg0: i32) -> (i32, i32, i32) {
    %c0_i32 = arith.constant 0 : i32
    %c0_i32_0 = arith.constant 0 : i32
    %c0_i32_1 = arith.constant 0 : i32
    %c0_i32_2 = arith.constant 0 : i32
    return %c0_i32, %c0_i32_0, %c0_i32_1 : i32, i32, i32
  }
  func.func @transform_6(%arg0: i32) -> (i32, i32) {
    %c0_i32 = arith.constant 0 : i32
    %c0_i32_0 = arith.constant 0 : i32
    return %arg0, %c0_i32 : i32, i32
  }
}

</mosaic_0001>

<llo_original>
// kernel: tpu_custom_call.1
$region0: #{tpu_custom_call.1}
  #allocation0 [shape = 'u32[]', space=smem, size = 0x4, offset = 0x4, fixed_abs, tag = 'smem constant byte address 0x4 - core index']
  #allocation1 [shape = 'u32[144,128]{1,0:T(1,128)}', space=vmem, size = 0x12000, scoped, tag = 'internal scratch']
  %s0 = inlined_call_operand.vmem [shape: bf16[16,32], index: 0, kind: input, shape index: {}]
  %s1 = inlined_call_operand.vmem [shape: f32[4,16,1], index: 1, kind: input, shape index: {}]
  %s2 = inlined_call_operand.vmem [shape: bf16[4,32,128], index: 2, kind: input, shape index: {}]
  %s3 = inlined_call_operand.vmem [shape: f32[4,1,128], index: 3, kind: input, shape index: {}]
  %s4 = inlined_call_operand.vmem [shape: bf16[4,128,32], index: 4, kind: input, shape index: {}]
  %s5 = inlined_call_operand.vmem [shape: f32[4,1,32], index: 5, kind: input, shape index: {}]
  %s6 = inlined_call_operand.hbm [shape: f32[16,32], index: 6, kind: output, shape index: {}]
  %s7 = sld [smem:[#allocation0]]
  $region34: #{tpu_custom_call.1} parent=0
    _
  %s9 = ssub.s32 1, %s7
  %s10 = scalar_select 0, %s9, %s7
  $region1: #{tpu_custom_call.1} parent=0
    #allocation2 [shape = 'u8[8192]{0}', space=vmem, size = 0x2000, scoped, tag = 'output window, operand 0, single buffered']
    #allocation3 [shape = 's32[1]{0}', space=sflag, size = 0x4, scoped, tag = 'scoped memory for tpu_custom_call.1']
    %11 = vsyncpa [#allocation3], 0
    // Predicated region
    $region2: #{tpu_custom_call.1} parent=1 // pred_check
      _
    $region3: #{tpu_custom_call.1} parent=1 // pred_check_branch
      %13 = sbr.rel (0) target = $region5
    $region4: #{tpu_custom_call.1} parent=1 // pred_region
      _
    $region5: #{tpu_custom_call.1} parent=1 // pred_fallthru
      _
    // Predicated region
    $region6: #{tpu_custom_call.1} parent=1 // pred_check
      _
    $region7: #{tpu_custom_call.1} parent=1 // pred_check_branch
      %15 = sbr.rel (0) target = $region9
    $region8: #{tpu_custom_call.1} parent=1 // pred_region
      _
    $region9: #{tpu_custom_call.1} parent=1 // pred_fallthru
      _
    // Predicated region
    $region10: #{tpu_custom_call.1} parent=1 // pred_check
      _
    $region11: #{tpu_custom_call.1} parent=1 // pred_check_branch
      %17 = sbr.rel (0) target = $region13
    $region12: #{tpu_custom_call.1} parent=1 // pred_region
      _
    $region13: #{tpu_custom_call.1} parent=1 // pred_fallthru
      _
    // Predicated region
    $region14: #{tpu_custom_call.1} parent=1 // pred_check
      _
    $region15: #{tpu_custom_call.1} parent=1 // pred_check_branch
      %19 = sbr.rel (0) target = $region17
    $region16: #{tpu_custom_call.1} parent=1 // pred_region
      _
    $region17: #{tpu_custom_call.1} parent=1 // pred_fallthru
      _
    // Predicated region
    $region18: #{tpu_custom_call.1} parent=1 // pred_check
      _
    $region19: #{tpu_custom_call.1} parent=1 // pred_check_branch
      %21 = sbr.rel (0) target = $region21
    $region20: #{tpu_custom_call.1} parent=1 // pred_region
      _
    $region21: #{tpu_custom_call.1} parent=1 // pred_fallthru
      _
    // Predicated region
    $region22: #{tpu_custom_call.1} parent=1 // pred_check
      _
    $region23: #{tpu_custom_call.1} parent=1 // pred_check_branch
      %23 = sbr.rel (0) target = $region25
    $region24: #{tpu_custom_call.1} parent=1 // pred_region
      _
    $region25: #{tpu_custom_call.1} parent=1 // pred_fallthru
      _
    %v25 = vld [vmem:[%s0] sm:$0xf]
    %v26 = vld [vmem:[%s0 + $0x4] sm:$0xf]
    %v27 = vld [vmem:[%s2] sm:$0xf]
    %v28 = vld [vmem:[%s2 + $0x4] sm:$0xf]
    %v29 = vld [vmem:[%s2 + $0x8] sm:$0xf]
    %v30 = vld [vmem:[%s2 + $0xc] sm:$0xf]
    %v31 = vld [vmem:[%s3] sm:$0x1]
    %v33 = vlaneseq
    %v34 = vshrl.u32 %v33, 7
    %v35 = vsub.s32 0, %v34
    %v36 = vrot.slane %v31, %v35
    %v40 = vunpack.c.l.b16 %v25
    %v41 = vunpack.c.l.b16 %v26
    %v42 = vpack.c.b16 %v41, %v40
    %v47 = vunpack.c.l.b16 %v27
    %v48 = vunpack.c.l.b16 %v28
    %v49 = vunpack.c.l.b16 %v29
    %v50 = vunpack.c.l.b16 %v30
    %v51 = vpack.c.b16 %v48, %v47
    %v52 = vpack.c.b16 %v50, %v49
    %vm55 = vcmask 261120
    %v57 = vsel %vm55, %v42, 0
    %59 = vmatprep.subr.bf16.mxu0 0
    %60 = vmatpush1.bf16.msra.mxu0 %v51
    %61 = vmatprep.subr.bf16.mxu0 0
    %62 = vmatpush1.bf16.msra.mxu0 %v52
    %63 = vmatprep.subr.bf16.mxu0 0
    %64 = vmatpush1.bf16.msra.mxu0 0
    %65 = vmatprep.subr.bf16.mxu0 0
    %66 = vmatpush1.bf16.msra.mxu0 0
    %67 = vmatprep.subr.bf16.mxu0 0
    %68 = vmatpush1.bf16.msra.mxu0 0
    %69 = vmatprep.subr.bf16.mxu0 0
    %70 = vmatpush1.bf16.msra.mxu0 0
    %71 = vmatprep.subr.bf16.mxu0 0
    %72 = vmatpush1.bf16.msra.mxu0 0
    %73 = vmatprep.subr.bf16.mxu0 0
    %74 = vmatpush1.bf16.msra.mxu0 0
    %75 = vmatprep.subr.bf16.mxu0 0
    %76 = vmatpush1.bf16.msra.mxu0 0
    %77 = vmatprep.subr.bf16.mxu0 0
    %78 = vmatpush1.bf16.msra.mxu0 0
    %79 = vmatprep.subr.bf16.mxu0 0
    %80 = vmatpush1.bf16.msra.mxu0 0
    %81 = vmatprep.subr.bf16.mxu0 0
    %82 = vmatpush1.bf16.msra.mxu0 0
    %83 = vmatprep.subr.bf16.mxu0 0
    %84 = vmatpush1.bf16.msra.mxu0 0
    %85 = vmatprep.subr.bf16.mxu0 0
    %86 = vmatpush1.bf16.msra.mxu0 0
    %87 = vmatprep.subr.bf16.mxu0 0
    %88 = vmatpush1.bf16.msra.mxu0 0
    %89 = vmatprep.subr.bf16.mxu0 0
    %90 = vmatpush1.bf16.msra.mxu0 0
    %91 = vmatprep.mubr.bf16.mxu0 0
    %92 = vmatmul.mubr.bf16.gmra.mrb[0].mxu0 %v57
    %v93 = vpop.f32.mrb[0].mxu0
    %v94 = vadd.f32 %v36, %v93
    %v95 = vpop.f32.mrb[0].mxu0
    %v96 = vpop.f32.mrb[0].mxu0
    %v97 = vadd.f32 %v36, %v96
    %v98 = vpop.f32.mrb[0].mxu0
    %99 = vdwg.mxu0
    %v100 = vmax.f32 %v94, 0.0
    %v101 = vmax.f32 %v97, 0.0
    %v102 = vpack.c.bf16 %v101, %v100
    %v103 = vld [vmem:[%s4] sm:$0xf]
    %v104 = vld [vmem:[%s4 + $0x4] sm:$0xf]
    %v105 = vld [vmem:[%s4 + $0x8] sm:$0xf]
    %v106 = vld [vmem:[%s4 + $0xc] sm:$0xf]
    %v107 = vld [vmem:[%s4 + $0x10] sm:$0xf]
    %v108 = vld [vmem:[%s4 + $0x14] sm:$0xf]
    %v109 = vld [vmem:[%s4 + $0x18] sm:$0xf]
    %v110 = vld [vmem:[%s4 + $0x1c] sm:$0xf]
    %v111 = vld [vmem:[%s4 + $0x20] sm:$0xf]
    %v112 = vld [vmem:[%s4 + $0x24] sm:$0xf]
    %v113 = vld [vmem:[%s4 + $0x28] sm:$0xf]
    %v114 = vld [vmem:[%s4 + $0x2c] sm:$0xf]
    %v115 = vld [vmem:[%s4 + $0x30] sm:$0xf]
    %v116 = vld [vmem:[%s4 + $0x34] sm:$0xf]
    %v117 = vld [vmem:[%s4 + $0x38] sm:$0xf]
    %v118 = vld [vmem:[%s4 + $0x3c] sm:$0xf]
    %v119 = vld [vmem:[%s5] sm:$0x1]
    %v121 = vlaneseq
    %v122 = vshrl.u32 %v121, 7
    %v123 = vsub.s32 0, %v122
    %v124 = vrot.slane %v119, %v123
    %v142 = vunpack.c.l.b16 %v103
    %v143 = vunpack.c.l.b16 %v104
    %v144 = vunpack.c.l.b16 %v105
    %v145 = vunpack.c.l.b16 %v106
    %v146 = vunpack.c.l.b16 %v107
    %v147 = vunpack.c.l.b16 %v108
    %v148 = vunpack.c.l.b16 %v109
    %v149 = vunpack.c.l.b16 %v110
    %v150 = vunpack.c.l.b16 %v111
    %v151 = vunpack.c.l.b16 %v112
    %v152 = vunpack.c.l.b16 %v113
    %v153 = vunpack.c.l.b16 %v114
    %v154 = vunpack.c.l.b16 %v115
    %v155 = vunpack.c.l.b16 %v116
    %v156 = vunpack.c.l.b16 %v117
    %v157 = vunpack.c.l.b16 %v118
    %v158 = vpack.c.b16 %v143, %v142
    %v159 = vpack.c.b16 %v145, %v144
    %v160 = vpack.c.b16 %v147, %v146
    %v161 = vpack.c.b16 %v149, %v148
    %v162 = vpack.c.b16 %v151, %v150
    %v163 = vpack.c.b16 %v153, %v152
    %v164 = vpack.c.b16 %v155, %v154
    %v165 = vpack.c.b16 %v157, %v156
    %174 = vmatprep.subr.bf16.mxu0 0
    %175 = vmatpush1.bf16.msra.mxu0 %v158
    %176 = vmatprep.subr.bf16.mxu0 0
    %177 = vmatpush1.bf16.msra.mxu0 %v159
    %178 = vmatprep.subr.bf16.mxu0 0
    %179 = vmatpush1.bf16.msra.mxu0 %v160
    %180 = vmatprep.subr.bf16.mxu0 0
    %181 = vmatpush1.bf16.msra.mxu0 %v161
    %182 = vmatprep.subr.bf16.mxu0 0
    %183 = vmatpush1.bf16.msra.mxu0 %v162
    %184 = vmatprep.subr.bf16.mxu0 0
    %185 = vmatpush1.bf16.msra.mxu0 %v163
    %186 = vmatprep.subr.bf16.mxu0 0
    %187 = vmatpush1.bf16.msra.mxu0 %v164
    %188 = vmatprep.subr.bf16.mxu0 0
    %189 = vmatpush1.bf16.msra.mxu0 %v165
    %190 = vmatprep.subr.bf16.mxu0 0
    %191 = vmatpush1.bf16.msra.mxu0 0
    %192 = vmatprep.subr.bf16.mxu0 0
    %193 = vmatpush1.bf16.msra.mxu0 0
    %194 = vmatprep.subr.bf16.mxu0 0
    %195 = vmatpush1.bf16.msra.mxu0 0
    %196 = vmatprep.subr.bf16.mxu0 0
    %197 = vmatpush1.bf16.msra.mxu0 0
    %198 = vmatprep.subr.bf16.mxu0 0
    %199 = vmatpush1.bf16.msra.mxu0 0
    %200 = vmatprep.subr.bf16.mxu0 0
    %201 = vmatpush1.bf16.msra.mxu0 0
    %202 = vmatprep.subr.bf16.mxu0 0
    %203 = vmatpush1.bf16.msra.mxu0 0
    %204 = vmatprep.subr.bf16.mxu0 0
    %205 = vmatpush1.bf16.msra.mxu0 0
    %206 = vmatprep.mubr.bf16.mxu0 0
    %207 = vmatmul.mubr.bf16.gmra.mrb[0].mxu0 %v102
    %v208 = vpop.f32.mrb[0].mxu0
    %v209 = vadd.f32 %v124, %v208
    %v210 = vpop.f32.mrb[0].mxu0
    %v211 = vpop.f32.mrb[0].mxu0
    %v212 = vadd.f32 %v124, %v211
    %v213 = vpop.f32.mrb[0].mxu0
    %214 = vdwg.mxu0
    %v215 = vld [vmem:[%s1] sm:$0xff]
    %v216 = vld [vmem:[%s1 + $0x8] sm:$0xff]
    %218 = vset.pattern.permute.xlu0 0
    %219 = vperm.xlu0 %218, %v215
    %v220 = vpop.permute.xlu0 %219
    %223 = vset.pattern.permute.xlu0 0
    %224 = vperm.xlu0 %223, %v216
    %v225 = vpop.permute.xlu0 %224
    %v227 = vmul.f32 %v220, %v209
    %v228 = vmul.f32 %v225, %v212
    %v229 = vadd.f32 %v227, 0.0
    %v230 = vadd.f32 %v228, 0.0
    %s231 = scalar_lea.vmem %s2, 16
    %v232 = vld [vmem:[%s231] sm:$0xf]
    %v233 = vld [vmem:[%s231 + $0x4] sm:$0xf]
    %v234 = vld [vmem:[%s231 + $0x8] sm:$0xf]
    %v235 = vld [vmem:[%s231 + $0xc] sm:$0xf]
    %s236 = scalar_lea.vmem %s3, 1
    %v237 = vld [vmem:[%s236] sm:$0x1]
    %v239 = vlaneseq
    %v240 = vshrl.u32 %v239, 7
    %v241 = vsub.s32 0, %v240
    %v242 = vrot.slane %v237, %v241
    %v248 = vunpack.c.l.b16 %v232
    %v249 = vunpack.c.l.b16 %v233
    %v250 = vunpack.c.l.b16 %v234
    %v251 = vunpack.c.l.b16 %v235
    %v252 = vpack.c.b16 %v249, %v248
    %v253 = vpack.c.b16 %v251, %v250
    %256 = vmatprep.subr.bf16.mxu0 0
    %257 = vmatpush1.bf16.msra.mxu0 %v252
    %258 = vmatprep.subr.bf16.mxu0 0
    %259 = vmatpush1.bf16.msra.mxu0 %v253
    %260 = vmatprep.subr.bf16.mxu0 0
    %261 = vmatpush1.bf16.msra.mxu0 0
    %262 = vmatprep.subr.bf16.mxu0 0
    %263 = vmatpush1.bf16.msra.mxu0 0
    %264 = vmatprep.subr.bf16.mxu0 0
    %265 = vmatpush1.bf16.msra.mxu0 0
    %266 = vmatprep.subr.bf16.mxu0 0
    %267 = vmatpush1.bf16.msra.mxu0 0
    %268 = vmatprep.subr.bf16.mxu0 0
    %269 = vmatpush1.bf16.msra.mxu0 0
    %270 = vmatprep.subr.bf16.mxu0 0
    %271 = vmatpush1.bf16.msra.mxu0 0
    %272 = vmatprep.subr.bf16.mxu0 0
    %273 = vmatpush1.bf16.msra.mxu0 0
    %274 = vmatprep.subr.bf16.mxu0 0
    %275 = vmatpush1.bf16.msra.mxu0 0
    %276 = vmatprep.subr.bf16.mxu0 0
    %277 = vmatpush1.bf16.msra.mxu0 0
    %278 = vmatprep.subr.bf16.mxu0 0
    %279 = vmatpush1.bf16.msra.mxu0 0
    %280 = vmatprep.subr.bf16.mxu0 0
    %281 = vmatpush1.bf16.msra.mxu0 0
    %282 = vmatprep.subr.bf16.mxu0 0
    %283 = vmatpush1.bf16.msra.mxu0 0
    %284 = vmatprep.subr.bf16.mxu0 0
    %285 = vmatpush1.bf16.msra.mxu0 0
    %286 = vmatprep.subr.bf16.mxu0 0
    %287 = vmatpush1.bf16.msra.mxu0 0
    %288 = vmatprep.mubr.bf16.mxu0 0
    %289 = vmatmul.mubr.bf16.gmra.mrb[0].mxu0 %v57
    %v290 = vpop.f32.mrb[0].mxu0
    %v291 = vadd.f32 %v242, %v290
    %v292 = vpop.f32.mrb[0].mxu0
    %v293 = vpop.f32.mrb[0].mxu0
    %v294 = vadd.f32 %v242, %v293
    %v295 = vpop.f32.mrb[0].mxu0
    %296 = vdwg.mxu0
    %v297 = vmax.f32 %v291, 0.0
    %v298 = vmax.f32 %v294, 0.0
    %v299 = vpack.c.bf16 %v298, %v297
    %s300 = scalar_lea.vmem %s4, 64
    %v301 = vld [vmem:[%s300] sm:$0xf]
    %v302 = vld [vmem:[%s300 + $0x4] sm:$0xf]
    %v303 = vld [vmem:[%s300 + $0x8] sm:$0xf]
    %v304 = vld [vmem:[%s300 + $0xc] sm:$0xf]
    %v305 = vld [vmem:[%s300 + $0x10] sm:$0xf]
    %v306 = vld [vmem:[%s300 + $0x14] sm:$0xf]
    %v307 = vld [vmem:[%s300 + $0x18] sm:$0xf]
    %v308 = vld [vmem:[%s300 + $0x1c] sm:$0xf]
    %v309 = vld [vmem:[%s300 + $0x20] sm:$0xf]
    %v310 = vld [vmem:[%s300 + $0x24] sm:$0xf]
    %v311 = vld [vmem:[%s300 + $0x28] sm:$0xf]
    %v312 = vld [vmem:[%s300 + $0x2c] sm:$0xf]
    %v313 = vld [vmem:[%s300 + $0x30] sm:$0xf]
    %v314 = vld [vmem:[%s300 + $0x34] sm:$0xf]
    %v315 = vld [vmem:[%s300 + $0x38] sm:$0xf]
    %v316 = vld [vmem:[%s300 + $0x3c] sm:$0xf]
    %s317 = scalar_lea.vmem %s5, 1
    %v318 = vld [vmem:[%s317] sm:$0x1]
    %v320 = vlaneseq
    %v321 = vshrl.u32 %v320, 7
    %v322 = vsub.s32 0, %v321
    %v323 = vrot.slane %v318, %v322
    %v341 = vunpack.c.l.b16 %v301
    %v342 = vunpack.c.l.b16 %v302
    %v343 = vunpack.c.l.b16 %v303
    %v344 = vunpack.c.l.b16 %v304
    %v345 = vunpack.c.l.b16 %v305
    %v346 = vunpack.c.l.b16 %v306
    %v347 = vunpack.c.l.b16 %v307
    %v348 = vunpack.c.l.b16 %v308
    %v349 = vunpack.c.l.b16 %v309
    %v350 = vunpack.c.l.b16 %v310
    %v351 = vunpack.c.l.b16 %v311
    %v352 = vunpack.c.l.b16 %v312
    %v353 = vunpack.c.l.b16 %v313
    %v354 = vunpack.c.l.b16 %v314
    %v355 = vunpack.c.l.b16 %v315
    %v356 = vunpack.c.l.b16 %v316
    %v357 = vpack.c.b16 %v342, %v341
    %v358 = vpack.c.b16 %v344, %v343
    %v359 = vpack.c.b16 %v346, %v345
    %v360 = vpack.c.b16 %v348, %v347
    %v361 = vpack.c.b16 %v350, %v349
    %v362 = vpack.c.b16 %v352, %v351
    %v363 = vpack.c.b16 %v354, %v353
    %v364 = vpack.c.b16 %v356, %v355
    %373 = vmatprep.subr.bf16.mxu0 0
    %374 = vmatpush1.bf16.msra.mxu0 %v357
    %375 = vmatprep.subr.bf16.mxu0 0
    %376 = vmatpush1.bf16.msra.mxu0 %v358
    %377 = vmatprep.subr.bf16.mxu0 0
    %378 = vmatpush1.bf16.msra.mxu0 %v359
    %379 = vmatprep.subr.bf16.mxu0 0
    %380 = vmatpush1.bf16.msra.mxu0 %v360
    %381 = vmatprep.subr.bf16.mxu0 0
    %382 = vmatpush1.bf16.msra.mxu0 %v361
    %383 = vmatprep.subr.bf16.mxu0 0
    %384 = vmatpush1.bf16.msra.mxu0 %v362
    %385 = vmatprep.subr.bf16.mxu0 0
    %386 = vmatpush1.bf16.msra.mxu0 %v363
    %387 = vmatprep.subr.bf16.mxu0 0
    %388 = vmatpush1.bf16.msra.mxu0 %v364
    %389 = vmatprep.subr.bf16.mxu0 0
    %390 = vmatpush1.bf16.msra.mxu0 0
    %391 = vmatprep.subr.bf16.mxu0 0
    %392 = vmatpush1.bf16.msra.mxu0 0
    %393 = vmatprep.subr.bf16.mxu0 0
    %394 = vmatpush1.bf16.msra.mxu0 0
    %395 = vmatprep.subr.bf16.mxu0 0
    %396 = vmatpush1.bf16.msra.mxu0 0
    %397 = vmatprep.subr.bf16.mxu0 0
    %398 = vmatpush1.bf16.msra.mxu0 0
    %399 = vmatprep.subr.bf16.mxu0 0
    %400 = vmatpush1.bf16.msra.mxu0 0
    %401 = vmatprep.subr.bf16.mxu0 0
    %402 = vmatpush1.bf16.msra.mxu0 0
    %403 = vmatprep.subr.bf16.mxu0 0
    %404 = vmatpush1.bf16.msra.mxu0 0
    %405 = vmatprep.mubr.bf16.mxu0 0
    %406 = vmatmul.mubr.bf16.gmra.mrb[0].mxu0 %v299
    %v407 = vpop.f32.mrb[0].mxu0
    %v408 = vadd.f32 %v323, %v407
    %v409 = vpop.f32.mrb[0].mxu0
    %v410 = vpop.f32.mrb[0].mxu0
    %v411 = vadd.f32 %v323, %v410
    %v412 = vpop.f32.mrb[0].mxu0
    %413 = vdwg.mxu0
    %s414 = scalar_lea.vmem %s1, 16
    %v415 = vld [vmem:[%s414] sm:$0xff]
    %v416 = vld [vmem:[%s414 + $0x8] sm:$0xff]
    %418 = vset.pattern.permute.xlu0 0
    %419 = vperm.xlu0 %418, %v415
    %v420 = vpop.permute.xlu0 %419
    %423 = vset.pattern.permute.xlu0 0
    %424 = vperm.xlu0 %423, %v416
    %v425 = vpop.permute.xlu0 %424
    %v427 = vmul.f32 %v420, %v408
    %v428 = vmul.f32 %v425, %v411
    %v429 = vadd.f32 %v229, %v427
    %v430 = vadd.f32 %v230, %v428
    %s431 = scalar_lea.vmem %s2, 32
    %v432 = vld [vmem:[%s431] sm:$0xf]
    %v433 = vld [vmem:[%s431 + $0x4] sm:$0xf]
    %v434 = vld [vmem:[%s431 + $0x8] sm:$0xf]
    %v435 = vld [vmem:[%s431 + $0xc] sm:$0xf]
    %s436 = scalar_lea.vmem %s3, 2
    %v437 = vld [vmem:[%s436] sm:$0x1]
    %v439 = vlaneseq
    %v440 = vshrl.u32 %v439, 7
    %v441 = vsub.s32 0, %v440
    %v442 = vrot.slane %v437, %v441
    %v448 = vunpack.c.l.b16 %v432
    %v449 = vunpack.c.l.b16 %v433
    %v450 = vunpack.c.l.b16 %v434
    %v451 = vunpack.c.l.b16 %v435
    %v452 = vpack.c.b16 %v449, %v448
    %v453 = vpack.c.b16 %v451, %v450
    %456 = vmatprep.subr.bf16.mxu0 0
    %457 = vmatpush1.bf16.msra.mxu0 %v452
    %458 = vmatprep.subr.bf16.mxu0 0
    %459 = vmatpush1.bf16.msra.mxu0 %v453
    %460 = vmatprep.subr.bf16.mxu0 0
    %461 = vmatpush1.bf16.msra.mxu0 0
    %462 = vmatprep.subr.bf16.mxu0 0
    %463 = vmatpush1.bf16.msra.mxu0 0
    %464 = vmatprep.subr.bf16.mxu0 0
    %465 = vmatpush1.bf16.msra.mxu0 0
    %466 = vmatprep.subr.bf16.mxu0 0
    %467 = vmatpush1.bf16.msra.mxu0 0
    %468 = vmatprep.subr.bf16.mxu0 0
    %469 = vmatpush1.bf16.msra.mxu0 0
    %470 = vmatprep.subr.bf16.mxu0 0
    %471 = vmatpush1.bf16.msra.mxu0 0
    %472 = vmatprep.subr.bf16.mxu0 0
    %473 = vmatpush1.bf16.msra.mxu0 0
    %474 = vmatprep.subr.bf16.mxu0 0
    %475 = vmatpush1.bf16.msra.mxu0 0
    %476 = vmatprep.subr.bf16.mxu0 0
    %477 = vmatpush1.bf16.msra.mxu0 0
    %478 = vmatprep.subr.bf16.mxu0 0
    %479 = vmatpush1.bf16.msra.mxu0 0
    %480 = vmatprep.subr.bf16.mxu0 0
    %481 = vmatpush1.bf16.msra.mxu0 0
    %482 = vmatprep.subr.bf16.mxu0 0
    %483 = vmatpush1.bf16.msra.mxu0 0
    %484 = vmatprep.subr.bf16.mxu0 0
    %485 = vmatpush1.bf16.msra.mxu0 0
    %486 = vmatprep.subr.bf16.mxu0 0
    %487 = vmatpush1.bf16.msra.mxu0 0
    %488 = vmatprep.mubr.bf16.mxu0 0
    %489 = vmatmul.mubr.bf16.gmra.mrb[0].mxu0 %v57
    %v490 = vpop.f32.mrb[0].mxu0
    %v491 = vadd.f32 %v442, %v490
    %v492 = vpop.f32.mrb[0].mxu0
    %v493 = vpop.f32.mrb[0].mxu0
    %v494 = vadd.f32 %v442, %v493
    %v495 = vpop.f32.mrb[0].mxu0
    %496 = vdwg.mxu0
    %v497 = vmax.f32 %v491, 0.0
    %v498 = vmax.f32 %v494, 0.0
    %v499 = vpack.c.bf16 %v498, %v497
    %s500 = scalar_lea.vmem %s4, 128
    %v501 = vld [vmem:[%s500] sm:$0xf]
    %v502 = vld [vmem:[%s500 + $0x4] sm:$0xf]
    %v503 = vld [vmem:[%s500 + $0x8] sm:$0xf]
    %v504 = vld [vmem:[%s500 + $0xc] sm:$0xf]
    %v505 = vld [vmem:[%s500 + $0x10] sm:$0xf]
    %v506 = vld [vmem:[%s500 + $0x14] sm:$0xf]
    %v507 = vld [vmem:[%s500 + $0x18] sm:$0xf]
    %v508 = vld [vmem:[%s500 + $0x1c] sm:$0xf]
    %v509 = vld [vmem:[%s500 + $0x20] sm:$0xf]
    %v510 = vld [vmem:[%s500 + $0x24] sm:$0xf]
    %v511 = vld [vmem:[%s500 + $0x28] sm:$0xf]
    %v512 = vld [vmem:[%s500 + $0x2c] sm:$0xf]
    %v513 = vld [vmem:[%s500 + $0x30] sm:$0xf]
    %v514 = vld [vmem:[%s500 + $0x34] sm:$0xf]
    %v515 = vld [vmem:[%s500 + $0x38] sm:$0xf]
    %v516 = vld [vmem:[%s500 + $0x3c] sm:$0xf]
    %s517 = scalar_lea.vmem %s5, 2
    %v518 = vld [vmem:[%s517] sm:$0x1]
    %v520 = vlaneseq
    %v521 = vshrl.u32 %v520, 7
    %v522 = vsub.s32 0, %v521
    %v523 = vrot.slane %v518, %v522
    %v541 = vunpack.c.l.b16 %v501
    %v542 = vunpack.c.l.b16 %v502
    %v543 = vunpack.c.l.b16 %v503
    %v544 = vunpack.c.l.b16 %v504
    %v545 = vunpack.c.l.b16 %v505
    %v546 = vunpack.c.l.b16 %v506
    %v547 = vunpack.c.l.b16 %v507
    %v548 = vunpack.c.l.b16 %v508
    %v549 = vunpack.c.l.b16 %v509
    %v550 = vunpack.c.l.b16 %v510
    %v551 = vunpack.c.l.b16 %v511
    %v552 = vunpack.c.l.b16 %v512
    %v553 = vunpack.c.l.b16 %v513
    %v554 = vunpack.c.l.b16 %v514
    %v555 = vunpack.c.l.b16 %v515
    %v556 = vunpack.c.l.b16 %v516
    %v557 = vpack.c.b16 %v542, %v541
    %v558 = vpack.c.b16 %v544, %v543
    %v559 = vpack.c.b16 %v546, %v545
    %v560 = vpack.c.b16 %v548, %v547
    %v561 = vpack.c.b16 %v550, %v549
    %v562 = vpack.c.b16 %v552, %v551
    %v563 = vpack.c.b16 %v554, %v553
    %v564 = vpack.c.b16 %v556, %v555
    %573 = vmatprep.subr.bf16.mxu0 0
    %574 = vmatpush1.bf16.msra.mxu0 %v557
    %575 = vmatprep.subr.bf16.mxu0 0
    %576 = vmatpush1.bf16.msra.mxu0 %v558
    %577 = vmatprep.subr.bf16.mxu0 0
    %578 = vmatpush1.bf16.msra.mxu0 %v559
    %579 = vmatprep.subr.bf16.mxu0 0
    %580 = vmatpush1.bf16.msra.mxu0 %v560
    %581 = vmatprep.subr.bf16.mxu0 0
    %582 = vmatpush1.bf16.msra.mxu0 %v561
    %583 = vmatprep.subr.bf16.mxu0 0
    %584 = vmatpush1.bf16.msra.mxu0 %v562
    %585 = vmatprep.subr.bf16.mxu0 0
    %586 = vmatpush1.bf16.msra.mxu0 %v563
    %587 = vmatprep.subr.bf16.mxu0 0
    %588 = vmatpush1.bf16.msra.mxu0 %v564
    %589 = vmatprep.subr.bf16.mxu0 0
    %590 = vmatpush1.bf16.msra.mxu0 0
    %591 = vmatprep.subr.bf16.mxu0 0
    %592 = vmatpush1.bf16.msra.mxu0 0
    %593 = vmatprep.subr.bf16.mxu0 0
    %594 = vmatpush1.bf16.msra.mxu0 0
    %595 = vmatprep.subr.bf16.mxu0 0
    %596 = vmatpush1.bf16.msra.mxu0 0
    %597 = vmatprep.subr.bf16.mxu0 0
    %598 = vmatpush1.bf16.msra.mxu0 0
    %599 = vmatprep.subr.bf16.mxu0 0
    %600 = vmatpush1.bf16.msra.mxu0 0
    %601 = vmatprep.subr.bf16.mxu0 0
    %602 = vmatpush1.bf16.msra.mxu0 0
    %603 = vmatprep.subr.bf16.mxu0 0
    %604 = vmatpush1.bf16.msra.mxu0 0
    %605 = vmatprep.mubr.bf16.mxu0 0
    %606 = vmatmul.mubr.bf16.gmra.mrb[0].mxu0 %v499
    %v607 = vpop.f32.mrb[0].mxu0
    %v608 = vadd.f32 %v523, %v607
    %v609 = vpop.f32.mrb[0].mxu0
    %v610 = vpop.f32.mrb[0].mxu0
    %v611 = vadd.f32 %v523, %v610
    %v612 = vpop.f32.mrb[0].mxu0
    %613 = vdwg.mxu0
    %s614 = scalar_lea.vmem %s1, 32
    %v615 = vld [vmem:[%s614] sm:$0xff]
    %v616 = vld [vmem:[%s614 + $0x8] sm:$0xff]
    %618 = vset.pattern.permute.xlu0 0
    %619 = vperm.xlu0 %618, %v615
    %v620 = vpop.permute.xlu0 %619
    %623 = vset.pattern.permute.xlu0 0
    %624 = vperm.xlu0 %623, %v616
    %v625 = vpop.permute.xlu0 %624
    %v627 = vmul.f32 %v620, %v608
    %v628 = vmul.f32 %v625, %v611
    %v629 = vadd.f32 %v429, %v627
    %v630 = vadd.f32 %v430, %v628
    %s631 = scalar_lea.vmem %s2, 48
    %v632 = vld [vmem:[%s631] sm:$0xf]
    %v633 = vld [vmem:[%s631 + $0x4] sm:$0xf]
    %v634 = vld [vmem:[%s631 + $0x8] sm:$0xf]
    %v635 = vld [vmem:[%s631 + $0xc] sm:$0xf]
    %s636 = scalar_lea.vmem %s3, 3
    %v637 = vld [vmem:[%s636] sm:$0x1]
    %v639 = vlaneseq
    %v640 = vshrl.u32 %v639, 7
    %v641 = vsub.s32 0, %v640
    %v642 = vrot.slane %v637, %v641
    %v648 = vunpack.c.l.b16 %v632
    %v649 = vunpack.c.l.b16 %v633
    %v650 = vunpack.c.l.b16 %v634
    %v651 = vunpack.c.l.b16 %v635
    %v652 = vpack.c.b16 %v649, %v648
    %v653 = vpack.c.b16 %v651, %v650
    %656 = vmatprep.subr.bf16.mxu0 0
    %657 = vmatpush1.bf16.msra.mxu0 %v652
    %658 = vmatprep.subr.bf16.mxu0 0
    %659 = vmatpush1.bf16.msra.mxu0 %v653
    %660 = vmatprep.subr.bf16.mxu0 0
    %661 = vmatpush1.bf16.msra.mxu0 0
    %662 = vmatprep.subr.bf16.mxu0 0
    %663 = vmatpush1.bf16.msra.mxu0 0
    %664 = vmatprep.subr.bf16.mxu0 0
    %665 = vmatpush1.bf16.msra.mxu0 0
    %666 = vmatprep.subr.bf16.mxu0 0
    %667 = vmatpush1.bf16.msra.mxu0 0
    %668 = vmatprep.subr.bf16.mxu0 0
    %669 = vmatpush1.bf16.msra.mxu0 0
    %670 = vmatprep.subr.bf16.mxu0 0
    %671 = vmatpush1.bf16.msra.mxu0 0
    %672 = vmatprep.subr.bf16.mxu0 0
    %673 = vmatpush1.bf16.msra.mxu0 0
    %674 = vmatprep.subr.bf16.mxu0 0
    %675 = vmatpush1.bf16.msra.mxu0 0
    %676 = vmatprep.subr.bf16.mxu0 0
    %677 = vmatpush1.bf16.msra.mxu0 0
    %678 = vmatprep.subr.bf16.mxu0 0
    %679 = vmatpush1.bf16.msra.mxu0 0
    %680 = vmatprep.subr.bf16.mxu0 0
    %681 = vmatpush1.bf16.msra.mxu0 0
    %682 = vmatprep.subr.bf16.mxu0 0
    %683 = vmatpush1.bf16.msra.mxu0 0
    %684 = vmatprep.subr.bf16.mxu0 0
    %685 = vmatpush1.bf16.msra.mxu0 0
    %686 = vmatprep.subr.bf16.mxu0 0
    %687 = vmatpush1.bf16.msra.mxu0 0
    %688 = vmatprep.mubr.bf16.mxu0 0
    %689 = vmatmul.mubr.bf16.gmra.mrb[0].mxu0 %v57
    %v690 = vpop.f32.mrb[0].mxu0
    %v691 = vadd.f32 %v642, %v690
    %v692 = vpop.f32.mrb[0].mxu0
    %v693 = vpop.f32.mrb[0].mxu0
    %v694 = vadd.f32 %v642, %v693
    %v695 = vpop.f32.mrb[0].mxu0
    %696 = vdwg.mxu0
    %v697 = vmax.f32 %v691, 0.0
    %v698 = vmax.f32 %v694, 0.0
    %v699 = vpack.c.bf16 %v698, %v697
    %s700 = scalar_lea.vmem %s4, 192
    %v701 = vld [vmem:[%s700] sm:$0xf]
    %v702 = vld [vmem:[%s700 + $0x4] sm:$0xf]
    %v703 = vld [vmem:[%s700 + $0x8] sm:$0xf]
    %v704 = vld [vmem:[%s700 + $0xc] sm:$0xf]
    %v705 = vld [vmem:[%s700 + $0x10] sm:$0xf]
    %v706 = vld [vmem:[%s700 + $0x14] sm:$0xf]
    %v707 = vld [vmem:[%s700 + $0x18] sm:$0xf]
    %v708 = vld [vmem:[%s700 + $0x1c] sm:$0xf]
    %v709 = vld [vmem:[%s700 + $0x20] sm:$0xf]
    %v710 = vld [vmem:[%s700 + $0x24] sm:$0xf]
    %v711 = vld [vmem:[%s700 + $0x28] sm:$0xf]
    %v712 = vld [vmem:[%s700 + $0x2c] sm:$0xf]
    %v713 = vld [vmem:[%s700 + $0x30] sm:$0xf]
    %v714 = vld [vmem:[%s700 + $0x34] sm:$0xf]
    %v715 = vld [vmem:[%s700 + $0x38] sm:$0xf]
    %v716 = vld [vmem:[%s700 + $0x3c] sm:$0xf]
    %s717 = scalar_lea.vmem %s5, 3
    %v718 = vld [vmem:[%s717] sm:$0x1]
    %v720 = vlaneseq
    %v721 = vshrl.u32 %v720, 7
    %v722 = vsub.s32 0, %v721
    %v723 = vrot.slane %v718, %v722
    %v741 = vunpack.c.l.b16 %v701
    %v742 = vunpack.c.l.b16 %v702
    %v743 = vunpack.c.l.b16 %v703
    %v744 = vunpack.c.l.b16 %v704
    %v745 = vunpack.c.l.b16 %v705
    %v746 = vunpack.c.l.b16 %v706
    %v747 = vunpack.c.l.b16 %v707
    %v748 = vunpack.c.l.b16 %v708
    %v749 = vunpack.c.l.b16 %v709
    %v750 = vunpack.c.l.b16 %v710
    %v751 = vunpack.c.l.b16 %v711
    %v752 = vunpack.c.l.b16 %v712
    %v753 = vunpack.c.l.b16 %v713
    %v754 = vunpack.c.l.b16 %v714
    %v755 = vunpack.c.l.b16 %v715
    %v756 = vunpack.c.l.b16 %v716
    %v757 = vpack.c.b16 %v742, %v741
    %v758 = vpack.c.b16 %v744, %v743
    %v759 = vpack.c.b16 %v746, %v745
    %v760 = vpack.c.b16 %v748, %v747
    %v761 = vpack.c.b16 %v750, %v749
    %v762 = vpack.c.b16 %v752, %v751
    %v763 = vpack.c.b16 %v754, %v753
    %v764 = vpack.c.b16 %v756, %v755
    %773 = vmatprep.subr.bf16.mxu0 0
    %774 = vmatpush1.bf16.msra.mxu0 %v757
    %775 = vmatprep.subr.bf16.mxu0 0
    %776 = vmatpush1.bf16.msra.mxu0 %v758
    %777 = vmatprep.subr.bf16.mxu0 0
    %778 = vmatpush1.bf16.msra.mxu0 %v759
    %779 = vmatprep.subr.bf16.mxu0 0
    %780 = vmatpush1.bf16.msra.mxu0 %v760
    %781 = vmatprep.subr.bf16.mxu0 0
    %782 = vmatpush1.bf16.msra.mxu0 %v761
    %783 = vmatprep.subr.bf16.mxu0 0
    %784 = vmatpush1.bf16.msra.mxu0 %v762
    %785 = vmatprep.subr.bf16.mxu0 0
    %786 = vmatpush1.bf16.msra.mxu0 %v763
    %787 = vmatprep.subr.bf16.mxu0 0
    %788 = vmatpush1.bf16.msra.mxu0 %v764
    %789 = vmatprep.subr.bf16.mxu0 0
    %790 = vmatpush1.bf16.msra.mxu0 0
    %791 = vmatprep.subr.bf16.mxu0 0
    %792 = vmatpush1.bf16.msra.mxu0 0
    %793 = vmatprep.subr.bf16.mxu0 0
    %794 = vmatpush1.bf16.msra.mxu0 0
    %795 = vmatprep.subr.bf16.mxu0 0
    %796 = vmatpush1.bf16.msra.mxu0 0
    %797 = vmatprep.subr.bf16.mxu0 0
    %798 = vmatpush1.bf16.msra.mxu0 0
    %799 = vmatprep.subr.bf16.mxu0 0
    %800 = vmatpush1.bf16.msra.mxu0 0
    %801 = vmatprep.subr.bf16.mxu0 0
    %802 = vmatpush1.bf16.msra.mxu0 0
    %803 = vmatprep.subr.bf16.mxu0 0
    %804 = vmatpush1.bf16.msra.mxu0 0
    %805 = vmatprep.mubr.bf16.mxu0 0
    %806 = vmatmul.mubr.bf16.gmra.mrb[0].mxu0 %v699
    %v807 = vpop.f32.mrb[0].mxu0
    %v808 = vadd.f32 %v723, %v807
    %v809 = vpop.f32.mrb[0].mxu0
    %v810 = vpop.f32.mrb[0].mxu0
    %v811 = vadd.f32 %v723, %v810
    %v812 = vpop.f32.mrb[0].mxu0
    %813 = vdwg.mxu0
    %s814 = scalar_lea.vmem %s1, 48
    %v815 = vld [vmem:[%s814] sm:$0xff]
    %v816 = vld [vmem:[%s814 + $0x8] sm:$0xff]
    %818 = vset.pattern.permute.xlu0 0
    %819 = vperm.xlu0 %818, %v815
    %v820 = vpop.permute.xlu0 %819
    %823 = vset.pattern.permute.xlu0 0
    %824 = vperm.xlu0 %823, %v816
    %v825 = vpop.permute.xlu0 %824
    %v827 = vmul.f32 %v820, %v808
    %v828 = vmul.f32 %v825, %v811
    %v829 = vadd.f32 %v629, %v827
    %v830 = vadd.f32 %v630, %v828
    %831 = vst.msk [vmem:[#allocation2] sm:$0xff] %vm55, %v829
    %832 = vst.msk [vmem:[#allocation2 + $0x8] sm:$0xff] %vm55, %v830
    // Predicated region
    $region26: #{tpu_custom_call.1} parent=1 // pred_check
      _
    $region27: #{tpu_custom_call.1} parent=1 // pred_check_branch
      %834 = sbr.rel (0) target = $region29
    $region28: #{tpu_custom_call.1} parent=1 // pred_region
      %s836 = ssub.s32 256, 256
      %837 = vsyncadd [#allocation3], %s836
      %s838 = sshll.u32 [#allocation2], 4
      %s839 = int_to_ptr.vmem [resolvable:$true] %s838
      %844 = dma.vmem_to_hbm [thread:$0]  %s839, 256, %s6, [#allocation3], 128, 128, 8
    $region29: #{tpu_custom_call.1} parent=1 // pred_fallthru
      _
    // Predicated region
    $region30: #{tpu_custom_call.1} parent=1 // pred_check
      _
    $region31: #{tpu_custom_call.1} parent=1 // pred_check_branch
      %846 = sbr.rel (0) target = $region33
    $region32: #{tpu_custom_call.1} parent=1 // pred_region
      %847 = dma.done [#allocation3], 256
    $region33: #{tpu_custom_call.1} parent=1 // pred_fallthru
      _
    %848 = vsyncpa [#allocation3], 1

</llo_original>
